<compile_context>
chip_gen: v5e
topology: v5e:2x2
jax: 0.10.0
libtpu: 0.0.40
codegen_flags: <defaults>
</compile_context>

<pallas_src>
import math

import jax
import jax.numpy as jnp
from jax.experimental import pallas as pl
from jax.experimental.pallas import tpu as pltpu

_INV_SQRT2 = 1.0 / math.sqrt(2.0)
# Keep the scoped VMEM request comfortably inside v7x's 64 MiB physical VMEM
# (v5e/v6e have 128 MiB physical, so this is safe everywhere).
_VMEM_CAP_BYTES = 56 * 1024 * 1024
_VMEM_FLOOR_BYTES = 16 * 1024 * 1024


def _round_up(x, m):
    return ((x + m - 1) // m) * m


def _gelu_exact(h):
    # nn.GELU() default = exact erf formulation (matches the PyTorch module).
    # TODO(synk): if profiling shows the VALU slot binding (small dim), switch
    # to the tanh/sigmoid approximation so the transcendental runs on the EUP.
    return 0.5 * h * (1.0 + jax.lax.erf(h * _INV_SQRT2))


# ----------------------------------------------------------------------------
# Kernels
# ----------------------------------------------------------------------------
def _tail_fusion_resident_kernel(
    he_ref, ihc_ref,                      # (tb, dim_p) activations, compute dtype
    w_he_ref, w_ihc_ref, w_mul_ref,       # (dim_p, dim_p) fused layer-1 weights
    b1_ref,                               # (1, dim_p) fused layer-1 bias, f32
    w2_ref,                               # (dim_p, ncls_p) head weight
    b2_ref,                               # (1, ncls_p) head bias, f32
    out_ref,                              # (tb, ncls_p) logits (lane-dense)
):
    he = he_ref[...]
    ihc = ihc_ref[...]

    # torch.mul fusion token, computed natively in the MXU operand dtype
    # (bf16 VALU on v6e/v7x; Mosaic inserts the widening casts on v5e).
    mul_tok = he * ihc

    # Folded fc + classifier layer 1 (3 matmuls, f32 MXU accumulation).
    h = (
        jnp.dot(he, w_he_ref[...], preferred_element_type=jnp.float32)
        + jnp.dot(ihc, w_ihc_ref[...], preferred_element_type=jnp.float32)
        + jnp.dot(mul_tok, w_mul_ref[...], preferred_element_type=jnp.float32)
        + b1_ref[...]
    )
    h = _gelu_exact(h)

    # Classifier layer 2 (head).  Output block is 128-lane dense.
    logits = (
        jnp.dot(h.astype(w2_ref.dtype), w2_ref[...], preferred_element_type=jnp.float32)
        + b2_ref[...]
    )
    out_ref[...] = logits.astype(out_ref.dtype)


def _tail_fusion_ktiled_kernel(
    he_ref, ihc_ref,                      # (tb, tk) activation slabs
    w_he_ref, w_ihc_ref, w_mul_ref,       # (tk, dim_p) streamed weight slabs
    b1_ref,                               # (1, dim_p) fused layer-1 bias, f32
    w2_ref,                               # (dim_p, ncls_p) head weight (resident)
    b2_ref,                               # (1, ncls_p) head bias, f32
    out_ref,                              # (tb, ncls_p) logits (lane-dense)
    acc_ref,                              # (tb, dim_p) f32 hidden accumulator
):
    k = pl.program_id(1)

    @pl.when(k == 0)
    def _():
        acc_ref[...] = jnp.zeros_like(acc_ref)

    he = he_ref[...]
    ihc = ihc_ref[...]
    mul_tok = he * ihc

    acc_ref[...] += (
        jnp.dot(he, w_he_ref[...], preferred_element_type=jnp.float32)
        + jnp.dot(ihc, w_ihc_ref[...], preferred_element_type=jnp.float32)
        + jnp.dot(mul_tok, w_mul_ref[...], preferred_element_type=jnp.float32)
    )

    @pl.when(k == pl.num_programs(1) - 1)
    def _():
        h = _gelu_exact(acc_ref[...] + b1_ref[...])
        logits = (
            jnp.dot(h.astype(w2_ref.dtype), w2_ref[...],
                    preferred_element_type=jnp.float32)
            + b2_ref[...]
        )
        out_ref[...] = logits.astype(out_ref.dtype)


# ----------------------------------------------------------------------------
# One-time parameter preparation (fold fc into classifier-1, pad, cast).
# ----------------------------------------------------------------------------
def prepare_tail_fusion_params(params, compute_dtype=jnp.bfloat16):
    """`params` uses torch layout: Linear.weight is (out_features, in_features)."""
    dim = params["b1"].shape[0]
    n_classes = params["b2"].shape[0]

    w_fc = params["w_fc"].T.astype(jnp.float32)            # (2*dim, dim)
    wfc_he, wfc_ihc = w_fc[:dim], w_fc[dim:]
    w1 = params["w1"].T.astype(jnp.float32)                # (3*dim, dim)
    w1_add, w1_mul, w1_cf = w1[:dim], w1[dim:2 * dim], w1[2 * dim:]
    w2 = params["w2"].T.astype(jnp.float32)                # (dim, n_classes)

    # Exact algebraic fusion, done once in f32.
    w_he = w1_add + wfc_he @ w1_cf
    w_ihc = w1_add + wfc_ihc @ w1_cf
    w_mul = w1_mul
    b1 = params["b_fc"].astype(jnp.float32) @ w1_cf + params["b1"].astype(jnp.float32)
    b2 = params["b2"].astype(jnp.float32)

    # Lane padding to multiples of 128 (zero pad => exact; padded logits are
    # sliced off by the wrapper).
    dim_p = max(_round_up(dim, 128), 128)
    ncls_p = max(_round_up(n_classes, 128), 128)

    def pad2(w, r, c):
        return jnp.pad(w, ((0, r - w.shape[0]), (0, c - w.shape[1])))

    # TODO(synk): on v7x, optionally store the three dim x dim weights in fp8
    # (scales folded into b_fused / a post-scale) for ~2x MXU throughput.
    return {
        "dim": dim,
        "n_classes": n_classes,
        "dim_p": dim_p,
        "ncls_p": ncls_p,
        "w_he": pad2(w_he, dim_p, dim_p).astype(compute_dtype),
        "w_ihc": pad2(w_ihc, dim_p, dim_p).astype(compute_dtype),
        "w_mul": pad2(w_mul, dim_p, dim_p).astype(compute_dtype),
        "b1": jnp.pad(b1, (0, dim_p - dim)).reshape(1, dim_p).astype(jnp.float32),
        "w2": pad2(w2, dim_p, ncls_p).astype(compute_dtype),
        "b2": jnp.pad(b2, (0, ncls_p - n_classes)).reshape(1, ncls_p).astype(jnp.float32),
    }


# ----------------------------------------------------------------------------
# Wrapper
# ----------------------------------------------------------------------------
def tail_fusion(he, ihc, prepared, *, block_b=512, block_k=512,
                out_dtype=jnp.float32, force_k_tiling=False):
    """he, ihc: (B, dim).  prepared: output of prepare_tail_fusion_params."""
    B, dim = he.shape
    assert dim == prepared["dim"]
    dim_p, ncls_p = prepared["dim_p"], prepared["ncls_p"]
    n_classes = prepared["n_classes"]
    compute_dtype = prepared["w_he"].dtype
    wbytes = jnp.dtype(compute_dtype).itemsize
    obytes = jnp.dtype(out_dtype).itemsize

    # ---- batch tiling: split B evenly over cdiv(B, block_b) steps, rounded
    # to the native sublane tile (16 rows bf16 / 8 rows f32). ----------------
    sub = 16 if wbytes < 4 else 8
    n_b = pl.cdiv(B, block_b)
    if n_b == 1 and B >= 2 * sub:
        # >=2 grid steps lets the "parallel" batch axis shard across the two
        # v7x TensorCores (costs only ~0.35us/step on single-TC chips).
        n_b = 2
    tb = _round_up(pl.cdiv(B, n_b), sub)
    n_b = pl.cdiv(B, tb)
    b_p = n_b * tb

    # ---- working-set estimate & path selection ------------------------------
    resident_weight_bytes = (3 * dim_p * dim_p + dim_p * ncls_p) * wbytes
    act_bytes = 2 * 2 * tb * dim_p * wbytes            # he, ihc (double-buffered)
    temp_bytes = 4 * tb * dim_p * 4 + 2 * tb * ncls_p * obytes
    use_k_tiling = force_k_tiling or (
        resident_weight_bytes + act_bytes + temp_bytes > _VMEM_CAP_BYTES)

    # ---- activation pad / cast (skipped when layout already matches) --------
    def _prep(x):
        if b_p != B or dim_p != dim:
            x = jnp.pad(x, ((0, b_p - B), (0, dim_p - dim)))
        return x if x.dtype == compute_dtype else x.astype(compute_dtype)

    args = (_prep(he), _prep(ihc),
            prepared["w_he"], prepared["w_ihc"], prepared["w_mul"],
            prepared["b1"], prepared["w2"], prepared["b2"])

    def _call(single_buffer_consts):
        def const_spec(shape):
            # Grid-invariant operand: fetched once, kept VMEM-resident.
            if single_buffer_consts:
                return pl.BlockSpec(shape, lambda *_: (0, 0),
                                    pipeline_mode=pl.Buffered(1))
            return pl.BlockSpec(shape, lambda *_: (0, 0))

        cbuf = 1 if single_buffer_consts else 2
        if not use_k_tiling:
            grid = (n_b,)
            in_specs = [
                pl.BlockSpec((tb, dim_p), lambda i: (i, 0)),
                pl.BlockSpec((tb, dim_p), lambda i: (i, 0)),
                const_spec((dim_p, dim_p)),
                const_spec((dim_p, dim_p)),
                const_spec((dim_p, dim_p)),
                const_spec((1, dim_p)),
                const_spec((dim_p, ncls_p)),
                const_spec((1, ncls_p)),
            ]
            out_specs = pl.BlockSpec((tb, ncls_p), lambda i: (i, 0))
            scratch_shapes = []
            kernel = _tail_fusion_resident_kernel
            dim_sem = ("parallel",)
            needed = (cbuf * (resident_weight_bytes + (dim_p + ncls_p) * 4)
                      + act_bytes + temp_bytes)
        else:
            # Stream (tk, dim_p) weight slabs; accumulate hidden layer in f32.
            tk = min(block_k, dim_p)
            while dim_p % tk:
                tk -= 128
            n_k = dim_p // tk
            grid = (n_b, n_k)
            in_specs = [
                pl.BlockSpec((tb, tk), lambda i, k: (i, k)),
                pl.BlockSpec((tb, tk), lambda i, k: (i, k)),
                pl.BlockSpec((tk, dim_p), lambda i, k: (k, 0)),
                pl.BlockSpec((tk, dim_p), lambda i, k: (k, 0)),
                pl.BlockSpec((tk, dim_p), lambda i, k: (k, 0)),
                const_spec((1, dim_p)),
                const_spec((dim_p, ncls_p)),
                const_spec((1, ncls_p)),
            ]
            out_specs = pl.BlockSpec((tb, ncls_p), lambda i, k: (i, 0))
            scratch_shapes = [pltpu.VMEM((tb, dim_p), jnp.float32)]
            kernel = _tail_fusion_ktiled_kernel
            dim_sem = ("parallel", "arbitrary")
            # TODO(synk): if this estimate still exceeds the VMEM cap for very
            # large dim, also shrink tb (and/or tk) before calling.
            needed = (2 * 3 * tk * dim_p * wbytes                       # weight slabs
                      + cbuf * (dim_p * ncls_p * wbytes + (dim_p + ncls_p) * 4)
                      + 2 * 2 * tb * tk * wbytes                        # activation slabs
                      + tb * dim_p * 4                                  # f32 accumulator
                      + temp_bytes)

        vmem_limit = int(min(max(int(needed * 1.25) + (2 << 20),
                                 _VMEM_FLOOR_BYTES), _VMEM_CAP_BYTES))

        return pl.pallas_call(
            kernel,
            out_shape=jax.ShapeDtypeStruct((b_p, ncls_p), out_dtype),
            grid=grid,
            in_specs=in_specs,
            out_specs=out_specs,
            scratch_shapes=scratch_shapes,
            compiler_params=pltpu.CompilerParams(
                dimension_semantics=dim_sem,
                vmem_limit_bytes=vmem_limit,
            ),
        )(*args)

    try:
        out_padded = _call(single_buffer_consts=True)
    except Exception:
        # Conservative fallback: identical kernel, default (double) buffering
        # for the grid-invariant operands.  Any genuine error re-raises here.
        out_padded = _call(single_buffer_consts=False)

    return out_padded[:B, :n_classes]


# ----------------------------------------------------------------------------
# Pure-JAX reference (mirrors the PyTorch module) and self-test
# ----------------------------------------------------------------------------
def _reference(he, ihc, params):
    add_tok = he + ihc
    mul_tok = he * ihc
    cf = jnp.concatenate([he, ihc], -1) @ params["w_fc"].T + params["b_fc"]
    x = jnp.concatenate([add_tok, mul_tok, cf], -1)
    h = x @ params["w1"].T + params["b1"]
    h = 0.5 * h * (1.0 + jax.lax.erf(h / jnp.sqrt(2.0)))
    return h @ params["w2"].T + params["b2"]


def _make_params(dim, n_classes, key):
    ks = jax.random.split(key, 6)
    scale = 0.05
    return {
        # torch layout: Linear.weight is (out_features, in_features)
        "w_fc": scale * jax.random.normal(ks[0], (dim, 2 * dim), jnp.float32),
        "b_fc": scale * jax.random.normal(ks[1], (dim,), jnp.float32),
        "w1":   scale * jax.random.normal(ks[2], (dim, 3 * dim), jnp.float32),
        "b1":   scale * jax.random.normal(ks[3], (dim,), jnp.float32),
        "w2":   scale * jax.random.normal(ks[4], (n_classes, dim), jnp.float32),
        "b2":   scale * jax.random.normal(ks[5], (n_classes,), jnp.float32),
    }


if __name__ == "__main__":
    key = jax.random.PRNGKey(0)

    # --- resident path (small shapes) ---------------------------------------
    B, dim, n_classes = 8, 32, 4
    k_p, k_he, k_ihc, key = jax.random.split(key, 4)
    params = _make_params(dim, n_classes, k_p)
    he = jax.random.normal(k_he, (B, dim), jnp.float32)
    ihc = jax.random.normal(k_ihc, (B, dim), jnp.float32)
    ref = _reference(he, ihc, params)

    prep_f32 = prepare_tail_fusion_params(params, compute_dtype=jnp.float32)
    out_f32 = jax.block_until_ready(tail_fusion(he, ihc, prep_f32))
    assert out_f32.shape == (B, n_classes)
    assert jnp.allclose(out_f32, ref, atol=1e-4, rtol=1e-4)

    prep_bf16 = prepare_tail_fusion_params(params, compute_dtype=jnp.bfloat16)
    out_bf16 = jax.block_until_ready(tail_fusion(he, ihc, prep_bf16))
    assert out_bf16.shape == (B, n_classes)
    assert jnp.allclose(out_bf16, ref, atol=2e-2, rtol=2e-2)

    # --- K-tiled path (forced; dim_p=256, tk=128 -> 2 K steps, 2 batch steps) -
    B2, dim2, ncls2 = 24, 256, 4
    k_p, k_he, k_ihc, key = jax.random.split(key, 4)
    params2 = _make_params(dim2, ncls2, k_p)
    he2 = jax.random.normal(k_he, (B2, dim2), jnp.float32)
    ihc2 = jax.random.normal(k_ihc, (B2, dim2), jnp.float32)
    ref2 = _reference(he2, ihc2, params2)

    prep2 = prepare_tail_fusion_params(params2, compute_dtype=jnp.float32)
    out2 = jax.block_until_ready(
        tail_fusion(he2, ihc2, prep2, force_k_tiling=True, block_k=128))
    assert out2.shape == (B2, ncls2)
    assert jnp.allclose(out2, ref2, atol=5e-4, rtol=5e-4)

    print("KERNEL_OK")
</pallas_src>

<mosaic_0001>
module attributes {stable_mosaic.version = 11 : i64} {
  func.func @_tail_fusion_resident_kernel(%arg0: i32, %arg1: memref<8x128xf32, #tpu.memory_space<vmem>>, %arg2: memref<8x128xf32, #tpu.memory_space<vmem>>, %arg3: memref<128x128xf32, #tpu.memory_space<vmem>>, %arg4: memref<128x128xf32, #tpu.memory_space<vmem>>, %arg5: memref<128x128xf32, #tpu.memory_space<vmem>>, %arg6: memref<1x128xf32, #tpu.memory_space<vmem>>, %arg7: memref<128x128xf32, #tpu.memory_space<vmem>>, %arg8: memref<1x128xf32, #tpu.memory_space<vmem>>, %arg9: memref<8x128xf32, #tpu.memory_space<vmem>>) attributes {dimension_semantics = [#tpu.dimension_semantics<parallel>], iteration_bounds = array<i64: 1>, scalar_prefetch = 0 : i64, scratch_operands = 0 : i64, tpu.core_type = #tpu.core_type<tc>, window_params = [{transform_indices = @transform_0, window_bounds = array<i64: 8, 128>}, {transform_indices = @transform_1, window_bounds = array<i64: 8, 128>}, {pipeline_mode = #tpu.pipeline_mode<synchronous>, transform_indices = @transform_2, window_bounds = array<i64: 128, 128>}, {pipeline_mode = #tpu.pipeline_mode<synchronous>, transform_indices = @transform_3, window_bounds = array<i64: 128, 128>}, {pipeline_mode = #tpu.pipeline_mode<synchronous>, transform_indices = @transform_4, window_bounds = array<i64: 128, 128>}, {pipeline_mode = #tpu.pipeline_mode<synchronous>, transform_indices = @transform_5, window_bounds = array<i64: 1, 128>}, {pipeline_mode = #tpu.pipeline_mode<synchronous>, transform_indices = @transform_6, window_bounds = array<i64: 128, 128>}, {pipeline_mode = #tpu.pipeline_mode<synchronous>, transform_indices = @transform_7, window_bounds = array<i64: 1, 128>}, {transform_indices = @transform_8, window_bounds = array<i64: 8, 128>}]} {
    %c0 = arith.constant 0 : index
    %c0_0 = arith.constant 0 : index
    %0 = vector.load %arg1[%c0, %c0_0] : memref<8x128xf32, #tpu.memory_space<vmem>>, vector<8x128xf32>
    %c0_1 = arith.constant 0 : index
    %c0_2 = arith.constant 0 : index
    %1 = vector.load %arg2[%c0_1, %c0_2] : memref<8x128xf32, #tpu.memory_space<vmem>>, vector<8x128xf32>
    %2 = arith.mulf %0, %1 : vector<8x128xf32>
    %c0_3 = arith.constant 0 : index
    %c0_4 = arith.constant 0 : index
    %3 = vector.load %arg3[%c0_3, %c0_4] : memref<128x128xf32, #tpu.memory_space<vmem>>, vector<128x128xf32>
    %cst = arith.constant dense<0.000000e+00> : vector<8x128xf32>
    %4 = tpu.matmul %0, %3, %cst {dimension_numbers = #tpu.dot_dimension_numbers<[1], [0], [0], [1], [0, 0, 1, 1], [], []>} : vector<8x128xf32>, vector<128x128xf32>, vector<8x128xf32> -> vector<8x128xf32>
    %c0_5 = arith.constant 0 : index
    %c0_6 = arith.constant 0 : index
    %5 = vector.load %arg4[%c0_5, %c0_6] : memref<128x128xf32, #tpu.memory_space<vmem>>, vector<128x128xf32>
    %cst_7 = arith.constant dense<0.000000e+00> : vector<8x128xf32>
    %6 = tpu.matmul %1, %5, %cst_7 {dimension_numbers = #tpu.dot_dimension_numbers<[1], [0], [0], [1], [0, 0, 1, 1], [], []>} : vector<8x128xf32>, vector<128x128xf32>, vector<8x128xf32> -> vector<8x128xf32>
    %7 = arith.addf %4, %6 : vector<8x128xf32>
    %c0_8 = arith.constant 0 : index
    %c0_9 = arith.constant 0 : index
    %8 = vector.load %arg5[%c0_8, %c0_9] : memref<128x128xf32, #tpu.memory_space<vmem>>, vector<128x128xf32>
    %cst_10 = arith.constant dense<0.000000e+00> : vector<8x128xf32>
    %9 = tpu.matmul %2, %8, %cst_10 {dimension_numbers = #tpu.dot_dimension_numbers<[1], [0], [0], [1], [0, 0, 1, 1], [], []>} : vector<8x128xf32>, vector<128x128xf32>, vector<8x128xf32> -> vector<8x128xf32>
    %10 = arith.addf %7, %9 : vector<8x128xf32>
    %c0_11 = arith.constant 0 : index
    %c0_12 = arith.constant 0 : index
    %11 = vector.load %arg6[%c0_11, %c0_12] : memref<1x128xf32, #tpu.memory_space<vmem>>, vector<1x128xf32>
    %12 = vector.broadcast %11 : vector<1x128xf32> to vector<8x128xf32>
    %13 = arith.addf %10, %12 : vector<8x128xf32>
    %cst_13 = arith.constant 5.000000e-01 : f32
    %14 = vector.broadcast %cst_13 : f32 to vector<8x128xf32>
    %15 = arith.mulf %14, %13 : vector<8x128xf32>
    %cst_14 = arith.constant 0.707106769 : f32
    %16 = vector.broadcast %cst_14 : f32 to vector<8x128xf32>
    %17 = arith.mulf %13, %16 : vector<8x128xf32>
    %18 = math.erf %17 : vector<8x128xf32>
    %cst_15 = arith.constant 1.000000e+00 : f32
    %19 = vector.broadcast %cst_15 : f32 to vector<8x128xf32>
    %20 = arith.addf %19, %18 : vector<8x128xf32>
    %21 = arith.mulf %15, %20 : vector<8x128xf32>
    %c0_16 = arith.constant 0 : index
    %c0_17 = arith.constant 0 : index
    %22 = vector.load %arg7[%c0_16, %c0_17] : memref<128x128xf32, #tpu.memory_space<vmem>>, vector<128x128xf32>
    %cst_18 = arith.constant dense<0.000000e+00> : vector<8x128xf32>
    %23 = tpu.matmul %21, %22, %cst_18 {dimension_numbers = #tpu.dot_dimension_numbers<[1], [0], [0], [1], [0, 0, 1, 1], [], []>} : vector<8x128xf32>, vector<128x128xf32>, vector<8x128xf32> -> vector<8x128xf32>
    %c0_19 = arith.constant 0 : index
    %c0_20 = arith.constant 0 : index
    %24 = vector.load %arg8[%c0_19, %c0_20] : memref<1x128xf32, #tpu.memory_space<vmem>>, vector<1x128xf32>
    %25 = vector.broadcast %24 : vector<1x128xf32> to vector<8x128xf32>
    %26 = arith.addf %23, %25 : vector<8x128xf32>
    %c0_21 = arith.constant 0 : index
    %c0_22 = arith.constant 0 : index
    %27 = vector.load %arg9[%c0_21, %c0_22] : memref<8x128xf32, #tpu.memory_space<vmem>>, vector<8x128xf32>
    tpu.vector_store %arg9[%c0_21, %c0_22], %26 {strides = array<i32>} : memref<8x128xf32, #tpu.memory_space<vmem>>, vector<8x128xf32>,
    return
  }
  func.func @transform_0(%arg0: i32) -> (i32, i32) {
    %c0_i32 = arith.constant 0 : i32
    %c0_i32_0 = arith.constant 0 : i32
    return %arg0, %c0_i32 : i32, i32
  }
  func.func @transform_1(%arg0: i32) -> (i32, i32) {
    %c0_i32 = arith.constant 0 : i32
    %c0_i32_0 = arith.constant 0 : i32
    return %arg0, %c0_i32 : i32, i32
  }
  func.func @transform_2(%arg0: i32) -> (i32, i32) {
    %c0_i32 = arith.constant 0 : i32
    %c0_i32_0 = arith.constant 0 : i32
    %c0_i32_1 = arith.constant 0 : i32
    return %c0_i32, %c0_i32_0 : i32, i32
  }
  func.func @transform_3(%arg0: i32) -> (i32, i32) {
    %c0_i32 = arith.constant 0 : i32
    %c0_i32_0 = arith.constant 0 : i32
    %c0_i32_1 = arith.constant 0 : i32
    return %c0_i32, %c0_i32_0 : i32, i32
  }
  func.func @transform_4(%arg0: i32) -> (i32, i32) {
    %c0_i32 = arith.constant 0 : i32
    %c0_i32_0 = arith.constant 0 : i32
    %c0_i32_1 = arith.constant 0 : i32
    return %c0_i32, %c0_i32_0 : i32, i32
  }
  func.func @transform_5(%arg0: i32) -> (i32, i32) {
    %c0_i32 = arith.constant 0 : i32
    %c0_i32_0 = arith.constant 0 : i32
    %c0_i32_1 = arith.constant 0 : i32
    return %c0_i32, %c0_i32_0 : i32, i32
  }
  func.func @transform_6(%arg0: i32) -> (i32, i32) {
    %c0_i32 = arith.constant 0 : i32
    %c0_i32_0 = arith.constant 0 : i32
    %c0_i32_1 = arith.constant 0 : i32
    return %c0_i32, %c0_i32_0 : i32, i32
  }
  func.func @transform_7(%arg0: i32) -> (i32, i32) {
    %c0_i32 = arith.constant 0 : i32
    %c0_i32_0 = arith.constant 0 : i32
    %c0_i32_1 = arith.constant 0 : i32
    return %c0_i32, %c0_i32_0 : i32, i32
  }
  func.func @transform_8(%arg0: i32) -> (i32, i32) {
    %c0_i32 = arith.constant 0 : i32
    %c0_i32_0 = arith.constant 0 : i32
    return %arg0, %c0_i32 : i32, i32
  }
}

module attributes {stable_mosaic.version = 11 : i64} {
  func.func @_tail_fusion_resident_kernel(%arg0: i32, %arg1: memref<8x128xf32, #tpu.memory_space<vmem>>, %arg2: memref<8x128xf32, #tpu.memory_space<vmem>>, %arg3: memref<128x128xf32, #tpu.memory_space<vmem>>, %arg4: memref<128x128xf32, #tpu.memory_space<vmem>>, %arg5: memref<128x128xf32, #tpu.memory_space<vmem>>, %arg6: memref<1x128xf32, #tpu.memory_space<vmem>>, %arg7: memref<128x128xf32, #tpu.memory_space<vmem>>, %arg8: memref<1x128xf32, #tpu.memory_space<vmem>>, %arg9: memref<8x128xf32, #tpu.memory_space<vmem>>) attributes {dimension_semantics = [#tpu.dimension_semantics<parallel>], iteration_bounds = array<i64: 1>, scalar_prefetch = 0 : i64, scratch_operands = 0 : i64, tpu.core_type = #tpu.core_type<tc>, window_params = [{transform_indices = @transform_0, window_bounds = array<i64: 8, 128>}, {transform_indices = @transform_1, window_bounds = array<i64: 8, 128>}, {pipeline_mode = #tpu.pipeline_mode<synchronous>, transform_indices = @transform_2, window_bounds = array<i64: 128, 128>}, {pipeline_mode = #tpu.pipeline_mode<synchronous>, transform_indices = @transform_3, window_bounds = array<i64: 128, 128>}, {pipeline_mode = #tpu.pipeline_mode<synchronous>, transform_indices = @transform_4, window_bounds = array<i64: 128, 128>}, {pipeline_mode = #tpu.pipeline_mode<synchronous>, transform_indices = @transform_5, window_bounds = array<i64: 1, 128>}, {pipeline_mode = #tpu.pipeline_mode<synchronous>, transform_indices = @transform_6, window_bounds = array<i64: 128, 128>}, {pipeline_mode = #tpu.pipeline_mode<synchronous>, transform_indices = @transform_7, window_bounds = array<i64: 1, 128>}, {transform_indices = @transform_8, window_bounds = array<i64: 8, 128>}]} {
    %c0 = arith.constant 0 : index
    %c0_0 = arith.constant 0 : index
    %0 = vector.load %arg1[%c0, %c0_0] : memref<8x128xf32, #tpu.memory_space<vmem>>, vector<8x128xf32>
    %c0_1 = arith.constant 0 : index
    %c0_2 = arith.constant 0 : index
    %1 = vector.load %arg2[%c0_1, %c0_2] : memref<8x128xf32, #tpu.memory_space<vmem>>, vector<8x128xf32>
    %2 = arith.mulf %0, %1 : vector<8x128xf32>
    %c0_3 = arith.constant 0 : index
    %c0_4 = arith.constant 0 : index
    %3 = vector.load %arg3[%c0_3, %c0_4] : memref<128x128xf32, #tpu.memory_space<vmem>>, vector<128x128xf32>
    %cst = arith.constant dense<0.000000e+00> : vector<8x128xf32>
    %4 = tpu.matmul %0, %3, %cst {dimension_numbers = #tpu.dot_dimension_numbers<[1], [0], [0], [1], [0, 0, 1, 1], [], []>} : vector<8x128xf32>, vector<128x128xf32>, vector<8x128xf32> -> vector<8x128xf32>
    %c0_5 = arith.constant 0 : index
    %c0_6 = arith.constant 0 : index
    %5 = vector.load %arg4[%c0_5, %c0_6] : memref<128x128xf32, #tpu.memory_space<vmem>>, vector<128x128xf32>
    %cst_7 = arith.constant dense<0.000000e+00> : vector<8x128xf32>
    %6 = tpu.matmul %1, %5, %cst_7 {dimension_numbers = #tpu.dot_dimension_numbers<[1], [0], [0], [1], [0, 0, 1, 1], [], []>} : vector<8x128xf32>, vector<128x128xf32>, vector<8x128xf32> -> vector<8x128xf32>
    %7 = arith.addf %4, %6 : vector<8x128xf32>
    %c0_8 = arith.constant 0 : index
    %c0_9 = arith.constant 0 : index
    %8 = vector.load %arg5[%c0_8, %c0_9] : memref<128x128xf32, #tpu.memory_space<vmem>>, vector<128x128xf32>
    %cst_10 = arith.constant dense<0.000000e+00> : vector<8x128xf32>
    %9 = tpu.matmul %2, %8, %cst_10 {dimension_numbers = #tpu.dot_dimension_numbers<[1], [0], [0], [1], [0, 0, 1, 1], [], []>} : vector<8x128xf32>, vector<128x128xf32>, vector<8x128xf32> -> vector<8x128xf32>
    %10 = arith.addf %7, %9 : vector<8x128xf32>
    %c0_11 = arith.constant 0 : index
    %c0_12 = arith.constant 0 : index
    %11 = vector.load %arg6[%c0_11, %c0_12] : memref<1x128xf32, #tpu.memory_space<vmem>>, vector<1x128xf32>
    %12 = vector.broadcast %11 : vector<1x128xf32> to vector<8x128xf32>
    %13 = arith.addf %10, %12 : vector<8x128xf32>
    %cst_13 = arith.constant 5.000000e-01 : f32
    %14 = vector.broadcast %cst_13 : f32 to vector<8x128xf32>
    %15 = arith.mulf %14, %13 : vector<8x128xf32>
    %cst_14 = arith.constant 0.707106769 : f32
    %16 = vector.broadcast %cst_14 : f32 to vector<8x128xf32>
    %17 = arith.mulf %13, %16 : vector<8x128xf32>
    %18 = math.erf %17 : vector<8x128xf32>
    %cst_15 = arith.constant 1.000000e+00 : f32
    %19 = vector.broadcast %cst_15 : f32 to vector<8x128xf32>
    %20 = arith.addf %19, %18 : vector<8x128xf32>
    %21 = arith.mulf %15, %20 : vector<8x128xf32>
    %c0_16 = arith.constant 0 : index
    %c0_17 = arith.constant 0 : index
    %22 = vector.load %arg7[%c0_16, %c0_17] : memref<128x128xf32, #tpu.memory_space<vmem>>, vector<128x128xf32>
    %cst_18 = arith.constant dense<0.000000e+00> : vector<8x128xf32>
    %23 = tpu.matmul %21, %22, %cst_18 {dimension_numbers = #tpu.dot_dimension_numbers<[1], [0], [0], [1], [0, 0, 1, 1], [], []>} : vector<8x128xf32>, vector<128x128xf32>, vector<8x128xf32> -> vector<8x128xf32>
    %c0_19 = arith.constant 0 : index
    %c0_20 = arith.constant 0 : index
    %24 = vector.load %arg8[%c0_19, %c0_20] : memref<1x128xf32, #tpu.memory_space<vmem>>, vector<1x128xf32>
    %25 = vector.broadcast %24 : vector<1x128xf32> to vector<8x128xf32>
    %26 = arith.addf %23, %25 : vector<8x128xf32>
    %c0_21 = arith.constant 0 : index
    %c0_22 = arith.constant 0 : index
    %27 = vector.load %arg9[%c0_21, %c0_22] : memref<8x128xf32, #tpu.memory_space<vmem>>, vector<8x128xf32>
    tpu.vector_store %arg9[%c0_21, %c0_22], %26 {strides = array<i32>} : memref<8x128xf32, #tpu.memory_space<vmem>>, vector<8x128xf32>,
    return
  }
  func.func @transform_0(%arg0: i32) -> (i32, i32) {
    %c0_i32 = arith.constant 0 : i32
    %c0_i32_0 = arith.constant 0 : i32
    return %arg0, %c0_i32 : i32, i32
  }
  func.func @transform_1(%arg0: i32) -> (i32, i32) {
    %c0_i32 = arith.constant 0 : i32
    %c0_i32_0 = arith.constant 0 : i32
    return %arg0, %c0_i32 : i32, i32
  }
  func.func @transform_2(%arg0: i32) -> (i32, i32) {
    %c0_i32 = arith.constant 0 : i32
    %c0_i32_0 = arith.constant 0 : i32
    %c0_i32_1 = arith.constant 0 : i32
    return %c0_i32, %c0_i32_0 : i32, i32
  }
  func.func @transform_3(%arg0: i32) -> (i32, i32) {
    %c0_i32 = arith.constant 0 : i32
    %c0_i32_0 = arith.constant 0 : i32
    %c0_i32_1 = arith.constant 0 : i32
    return %c0_i32, %c0_i32_0 : i32, i32
  }
  func.func @transform_4(%arg0: i32) -> (i32, i32) {
    %c0_i32 = arith.constant 0 : i32
    %c0_i32_0 = arith.constant 0 : i32
    %c0_i32_1 = arith.constant 0 : i32
    return %c0_i32, %c0_i32_0 : i32, i32
  }
  func.func @transform_5(%arg0: i32) -> (i32, i32) {
    %c0_i32 = arith.constant 0 : i32
    %c0_i32_0 = arith.constant 0 : i32
    %c0_i32_1 = arith.constant 0 : i32
    return %c0_i32, %c0_i32_0 : i32, i32
  }
  func.func @transform_6(%arg0: i32) -> (i32, i32) {
    %c0_i32 = arith.constant 0 : i32
    %c0_i32_0 = arith.constant 0 : i32
    %c0_i32_1 = arith.constant 0 : i32
    return %c0_i32, %c0_i32_0 : i32, i32
  }
  func.func @transform_7(%arg0: i32) -> (i32, i32) {
    %c0_i32 = arith.constant 0 : i32
    %c0_i32_0 = arith.constant 0 : i32
    %c0_i32_1 = arith.constant 0 : i32
    return %c0_i32, %c0_i32_0 : i32, i32
  }
  func.func @transform_8(%arg0: i32) -> (i32, i32) {
    %c0_i32 = arith.constant 0 : i32
    %c0_i32_0 = arith.constant 0 : i32
    return %arg0, %c0_i32 : i32, i32
  }
}

</mosaic_0001>

<llo_original>
// kernel: tpu_custom_call.1
$region0: #{tpu_custom_call.1}
  #allocation0 [shape = 'u32[]', space=smem, size = 0x4, offset = 0x4, fixed_abs, tag = 'smem constant byte address 0x4 - core index']
  #allocation1 [shape = 'u32[72,128]{1,0:T(1,128)}', space=vmem, size = 0x9000, scoped, tag = 'internal scratch']
  %s0 = inlined_call_operand.hbm [shape: f32[8,128], index: 0, kind: input, shape index: {}]
  %s1 = inlined_call_operand.hbm [shape: f32[8,128], index: 1, kind: input, shape index: {}]
  %s2 = inlined_call_operand.hbm [shape: f32[128,128], index: 2, kind: input, shape index: {}]
  %s3 = inlined_call_operand.hbm [shape: f32[128,128], index: 3, kind: input, shape index: {}]
  %s4 = inlined_call_operand.hbm [shape: f32[128,128], index: 4, kind: input, shape index: {}]
  %s5 = inlined_call_operand.vmem [shape: f32[1,128], index: 5, kind: input, shape index: {}]
  %s6 = inlined_call_operand.hbm [shape: f32[128,128], index: 6, kind: input, shape index: {}]
  %s7 = inlined_call_operand.vmem [shape: f32[1,128], index: 7, kind: input, shape index: {}]
  %s8 = inlined_call_operand.hbm [shape: f32[8,128], index: 8, kind: output, shape index: {}]
  %s9 = sld [smem:[#allocation0]]
  $region66: #{tpu_custom_call.1} parent=0
    _
  %s11 = ssub.s32 1, %s9
  %s12 = scalar_select 0, %s11, %s9
  $region1: #{tpu_custom_call.1} parent=0
    #allocation2 [shape = 'u8[4096]{0}', space=vmem, size = 0x1000, scoped, tag = 'input window, operand 0, single buffered']
    #allocation3 [shape = 's32[1]{0}', space=sflag, size = 0x4, scoped, tag = 'scoped memory for tpu_custom_call.1']
    #allocation4 [shape = 's32[1]{0}', space=sflag, size = 0x4, scoped, tag = 'scoped memory for tpu_custom_call.1']
    #allocation5 [shape = 'u8[4096]{0}', space=vmem, size = 0x1000, scoped, tag = 'input window, operand 1, single buffered']
    #allocation6 [shape = 's32[1]{0}', space=sflag, size = 0x4, scoped, tag = 'scoped memory for tpu_custom_call.1']
    #allocation7 [shape = 'u8[65536]{0}', space=vmem, size = 0x10000, scoped, tag = 'input window, operand 2, single buffered']
    #allocation8 [shape = 'u8[65536]{0}', space=vmem, size = 0x10000, scoped, tag = 'input window, operand 3, single buffered']
    #allocation9 [shape = 's32[1]{0}', space=sflag, size = 0x4, scoped, tag = 'scoped memory for tpu_custom_call.1']
    #allocation10 [shape = 'u8[65536]{0}', space=vmem, size = 0x10000, scoped, tag = 'input window, operand 4, single buffered']
    #allocation11 [shape = 'u8[65536]{0}', space=vmem, size = 0x10000, scoped, tag = 'input window, operand 6, single buffered']
    #allocation12 [shape = 's32[1]{0}', space=sflag, size = 0x4, scoped, tag = 'scoped memory for tpu_custom_call.1']
    #allocation13 [shape = 'u8[4096]{0}', space=vmem, size = 0x1000, scoped, tag = 'output window, operand 0, single buffered']
    %13 = vsyncpa [#allocation3], 0
    %14 = vsyncpa [#allocation6], 0
    %15 = vsyncpa [#allocation9], 0
    %16 = vsyncpa [#allocation12], 0
    %17 = vsyncpa [#allocation4], 0
    // Predicated region
    $region2: #{tpu_custom_call.1} parent=1 // pred_check
      _
    $region3: #{tpu_custom_call.1} parent=1 // pred_check_branch
      %19 = sbr.rel (0) target = $region5
    $region4: #{tpu_custom_call.1} parent=1 // pred_region
      %21 = vsyncadd [#allocation3], 0
      %s23 = sshll.u32 %s0, 4
      %s24 = int_to_ptr.hbm [resolvable:$true] %s23
      %s25 = sshll.u32 [#allocation2], 4
      %s26 = int_to_ptr.vmem [resolvable:$true] %s25
      %28 = dma.hbm_to_vmem [thread:$0]  %s24, 128, %s26, [#allocation3]
    $region5: #{tpu_custom_call.1} parent=1 // pred_fallthru
      _
    // Predicated region
    $region6: #{tpu_custom_call.1} parent=1 // pred_check
      _
    $region7: #{tpu_custom_call.1} parent=1 // pred_check_branch
      %30 = sbr.rel (0) target = $region9
    $region8: #{tpu_custom_call.1} parent=1 // pred_region
      %32 = vsyncadd [#allocation6], 0
      %s34 = sshll.u32 %s1, 4
      %s35 = int_to_ptr.hbm [resolvable:$true] %s34
      %s36 = sshll.u32 [#allocation5], 4
      %s37 = int_to_ptr.vmem [resolvable:$true] %s36
      %39 = dma.hbm_to_vmem [thread:$0]  %s35, 128, %s37, [#allocation6]
    $region9: #{tpu_custom_call.1} parent=1 // pred_fallthru
      _
    // Predicated region
    $region10: #{tpu_custom_call.1} parent=1 // pred_check
      _
    $region11: #{tpu_custom_call.1} parent=1 // pred_check_branch
      %41 = sbr.rel (0) target = $region13
    $region12: #{tpu_custom_call.1} parent=1 // pred_region
      %43 = vsyncadd [#allocation6], 0
      %s44 = sshll.u32 %s2, 4
      %s45 = int_to_ptr.hbm [resolvable:$true] %s44
      %s46 = sshll.u32 [#allocation7], 4
      %s47 = int_to_ptr.vmem [resolvable:$true] %s46
      %52 = dma.hbm_to_vmem [thread:$0]  %s45, 2048, %s47, [#allocation6], 128, 128, 8
    $region13: #{tpu_custom_call.1} parent=1 // pred_fallthru
      _
    // Predicated region
    $region14: #{tpu_custom_call.1} parent=1 // pred_check
      _
    $region15: #{tpu_custom_call.1} parent=1 // pred_check_branch
      %54 = sbr.rel (0) target = $region17
    $region16: #{tpu_custom_call.1} parent=1 // pred_region
      %56 = vsyncadd [#allocation9], 0
      %s57 = sshll.u32 %s3, 4
      %s58 = int_to_ptr.hbm [resolvable:$true] %s57
      %s59 = sshll.u32 [#allocation8], 4
      %s60 = int_to_ptr.vmem [resolvable:$true] %s59
      %65 = dma.hbm_to_vmem [thread:$0]  %s58, 2048, %s60, [#allocation9], 128, 128, 8
    $region17: #{tpu_custom_call.1} parent=1 // pred_fallthru
      _
    // Predicated region
    $region18: #{tpu_custom_call.1} parent=1 // pred_check
      _
    $region19: #{tpu_custom_call.1} parent=1 // pred_check_branch
      %67 = sbr.rel (0) target = $region21
    $region20: #{tpu_custom_call.1} parent=1 // pred_region
      %69 = vsyncadd [#allocation9], 0
      %s70 = sshll.u32 %s4, 4
      %s71 = int_to_ptr.hbm [resolvable:$true] %s70
      %s72 = sshll.u32 [#allocation10], 4
      %s73 = int_to_ptr.vmem [resolvable:$true] %s72
      %78 = dma.hbm_to_vmem [thread:$0]  %s71, 2048, %s73, [#allocation9], 128, 128, 8
    $region21: #{tpu_custom_call.1} parent=1 // pred_fallthru
      _
    // Predicated region
    $region22: #{tpu_custom_call.1} parent=1 // pred_check
      _
    $region23: #{tpu_custom_call.1} parent=1 // pred_check_branch
      %80 = sbr.rel (0) target = $region25
    $region24: #{tpu_custom_call.1} parent=1 // pred_region
      _
    $region25: #{tpu_custom_call.1} parent=1 // pred_fallthru
      _
    // Predicated region
    $region26: #{tpu_custom_call.1} parent=1 // pred_check
      _
    $region27: #{tpu_custom_call.1} parent=1 // pred_check_branch
      %82 = sbr.rel (0) target = $region29
    $region28: #{tpu_custom_call.1} parent=1 // pred_region
      %84 = vsyncadd [#allocation12], 0
      %s85 = sshll.u32 %s6, 4
      %s86 = int_to_ptr.hbm [resolvable:$true] %s85
      %s87 = sshll.u32 [#allocation11], 4
      %s88 = int_to_ptr.vmem [resolvable:$true] %s87
      %93 = dma.hbm_to_vmem [thread:$0]  %s86, 2048, %s88, [#allocation12], 128, 128, 8
    $region29: #{tpu_custom_call.1} parent=1 // pred_fallthru
      _
    // Predicated region
    $region30: #{tpu_custom_call.1} parent=1 // pred_check
      _
    $region31: #{tpu_custom_call.1} parent=1 // pred_check_branch
      %95 = sbr.rel (0) target = $region33
    $region32: #{tpu_custom_call.1} parent=1 // pred_region
      _
    $region33: #{tpu_custom_call.1} parent=1 // pred_fallthru
      _
    // Predicated region
    $region34: #{tpu_custom_call.1} parent=1 // pred_check
      _
    $region35: #{tpu_custom_call.1} parent=1 // pred_check_branch
      %97 = sbr.rel (0) target = $region37
    $region36: #{tpu_custom_call.1} parent=1 // pred_region
      %99 = dma.done [#allocation3], 128
    $region37: #{tpu_custom_call.1} parent=1 // pred_fallthru
      _
    // Predicated region
    $region38: #{tpu_custom_call.1} parent=1 // pred_check
      _
    $region39: #{tpu_custom_call.1} parent=1 // pred_check_branch
      %101 = sbr.rel (0) target = $region41
    $region40: #{tpu_custom_call.1} parent=1 // pred_region
      %103 = dma.done [#allocation6], 128
    $region41: #{tpu_custom_call.1} parent=1 // pred_fallthru
      _
    // Predicated region
    $region42: #{tpu_custom_call.1} parent=1 // pred_check
      _
    $region43: #{tpu_custom_call.1} parent=1 // pred_check_branch
      %105 = sbr.rel (0) target = $region45
    $region44: #{tpu_custom_call.1} parent=1 // pred_region
      %107 = dma.done [#allocation6], 2048
    $region45: #{tpu_custom_call.1} parent=1 // pred_fallthru
      _
    // Predicated region
    $region46: #{tpu_custom_call.1} parent=1 // pred_check
      _
    $region47: #{tpu_custom_call.1} parent=1 // pred_check_branch
      %109 = sbr.rel (0) target = $region49
    $region48: #{tpu_custom_call.1} parent=1 // pred_region
      %111 = dma.done [#allocation9], 2048
    $region49: #{tpu_custom_call.1} parent=1 // pred_fallthru
      _
    // Predicated region
    $region50: #{tpu_custom_call.1} parent=1 // pred_check
      _
    $region51: #{tpu_custom_call.1} parent=1 // pred_check_branch
      %113 = sbr.rel (0) target = $region53
    $region52: #{tpu_custom_call.1} parent=1 // pred_region
      %115 = dma.done [#allocation9], 2048
    $region53: #{tpu_custom_call.1} parent=1 // pred_fallthru
      _
    // Predicated region
    $region54: #{tpu_custom_call.1} parent=1 // pred_check
      _
    $region55: #{tpu_custom_call.1} parent=1 // pred_check_branch
      %117 = sbr.rel (0) target = $region57
    $region56: #{tpu_custom_call.1} parent=1 // pred_region
      %119 = dma.done [#allocation12], 2048
    $region57: #{tpu_custom_call.1} parent=1 // pred_fallthru
      _
    %v120 = vld [vmem:[#allocation2] sm:$0xff]
    %v121 = vld [vmem:[#allocation5] sm:$0xff]
    %v122 = vmul.f32 %v120, %v121
    %v123 = vld [vmem:[#allocation7] sm:$0xff]
    %v124 = vld [vmem:[#allocation7 + $0x8] sm:$0xff]
    %v125 = vld [vmem:[#allocation7 + $0x10] sm:$0xff]
    %v126 = vld [vmem:[#allocation7 + $0x18] sm:$0xff]
    %v127 = vld [vmem:[#allocation7 + $0x20] sm:$0xff]
    %v128 = vld [vmem:[#allocation7 + $0x28] sm:$0xff]
    %v129 = vld [vmem:[#allocation7 + $0x30] sm:$0xff]
    %v130 = vld [vmem:[#allocation7 + $0x38] sm:$0xff]
    %v131 = vld [vmem:[#allocation7 + $0x40] sm:$0xff]
    %v132 = vld [vmem:[#allocation7 + $0x48] sm:$0xff]
    %v133 = vld [vmem:[#allocation7 + $0x50] sm:$0xff]
    %v134 = vld [vmem:[#allocation7 + $0x58] sm:$0xff]
    %v135 = vld [vmem:[#allocation7 + $0x60] sm:$0xff]
    %v136 = vld [vmem:[#allocation7 + $0x68] sm:$0xff]
    %v137 = vld [vmem:[#allocation7 + $0x70] sm:$0xff]
    %v138 = vld [vmem:[#allocation7 + $0x78] sm:$0xff]
    %v139 = vld [vmem:[#allocation8] sm:$0xff]
    %v140 = vld [vmem:[#allocation8 + $0x8] sm:$0xff]
    %v141 = vld [vmem:[#allocation8 + $0x10] sm:$0xff]
    %v142 = vld [vmem:[#allocation8 + $0x18] sm:$0xff]
    %v143 = vld [vmem:[#allocation8 + $0x20] sm:$0xff]
    %v144 = vld [vmem:[#allocation8 + $0x28] sm:$0xff]
    %v145 = vld [vmem:[#allocation8 + $0x30] sm:$0xff]
    %v146 = vld [vmem:[#allocation8 + $0x38] sm:$0xff]
    %v147 = vld [vmem:[#allocation8 + $0x40] sm:$0xff]
    %v148 = vld [vmem:[#allocation8 + $0x48] sm:$0xff]
    %v149 = vld [vmem:[#allocation8 + $0x50] sm:$0xff]
    %v150 = vld [vmem:[#allocation8 + $0x58] sm:$0xff]
    %v151 = vld [vmem:[#allocation8 + $0x60] sm:$0xff]
    %v152 = vld [vmem:[#allocation8 + $0x68] sm:$0xff]
    %v153 = vld [vmem:[#allocation8 + $0x70] sm:$0xff]
    %v154 = vld [vmem:[#allocation8 + $0x78] sm:$0xff]
    %155 = vmatpush.msra.mxu0 %v154
    %156 = vmatpush.msra.mxu0 %v153
    %157 = vmatpush.msra.mxu0 %v152
    %158 = vmatpush.msra.mxu0 %v151
    %159 = vmatpush.msra.mxu0 %v150
    %160 = vmatpush.msra.mxu0 %v149
    %161 = vmatpush.msra.mxu0 %v148
    %162 = vmatpush.msra.mxu0 %v147
    %163 = vmatpush.msra.mxu0 %v146
    %164 = vmatpush.msra.mxu0 %v145
    %165 = vmatpush.msra.mxu0 %v144
    %166 = vmatpush.msra.mxu0 %v143
    %167 = vmatpush.msra.mxu0 %v142
    %168 = vmatpush.msra.mxu0 %v141
    %169 = vmatpush.msra.mxu0 %v140
    %170 = vmatpush.msra.mxu0 %v139
    %171 = vmatmul.f32.gmra.mxu0 %v121
    %v172 = vpop.f32.mrf.mxu0
    %v173 = vadd.f32 0.0, %v172
    %174 = vdwg.mxu0
    %175 = vmatpush.msra.mxu0 %v138
    %176 = vmatpush.msra.mxu0 %v137
    %177 = vmatpush.msra.mxu0 %v136
    %178 = vmatpush.msra.mxu0 %v135
    %179 = vmatpush.msra.mxu0 %v134
    %180 = vmatpush.msra.mxu0 %v133
    %181 = vmatpush.msra.mxu0 %v132
    %182 = vmatpush.msra.mxu0 %v131
    %183 = vmatpush.msra.mxu0 %v130
    %184 = vmatpush.msra.mxu0 %v129
    %185 = vmatpush.msra.mxu0 %v128
    %186 = vmatpush.msra.mxu0 %v127
    %187 = vmatpush.msra.mxu0 %v126
    %188 = vmatpush.msra.mxu0 %v125
    %189 = vmatpush.msra.mxu0 %v124
    %190 = vmatpush.msra.mxu0 %v123
    %191 = vmatmul.f32.gmra.mxu0 %v120
    %v192 = vpop.f32.mrf.mxu0
    %v193 = vadd.f32 %v173, %v192
    %194 = vdwg.mxu0
    %v195 = vld [vmem:[#allocation10] sm:$0xff]
    %v196 = vld [vmem:[#allocation10 + $0x8] sm:$0xff]
    %v197 = vld [vmem:[#allocation10 + $0x10] sm:$0xff]
    %v198 = vld [vmem:[#allocation10 + $0x18] sm:$0xff]
    %v199 = vld [vmem:[#allocation10 + $0x20] sm:$0xff]
    %v200 = vld [vmem:[#allocation10 + $0x28] sm:$0xff]
    %v201 = vld [vmem:[#allocation10 + $0x30] sm:$0xff]
    %v202 = vld [vmem:[#allocation10 + $0x38] sm:$0xff]
    %v203 = vld [vmem:[#allocation10 + $0x40] sm:$0xff]
    %v204 = vld [vmem:[#allocation10 + $0x48] sm:$0xff]
    %v205 = vld [vmem:[#allocation10 + $0x50] sm:$0xff]
    %v206 = vld [vmem:[#allocation10 + $0x58] sm:$0xff]
    %v207 = vld [vmem:[#allocation10 + $0x60] sm:$0xff]
    %v208 = vld [vmem:[#allocation10 + $0x68] sm:$0xff]
    %v209 = vld [vmem:[#allocation10 + $0x70] sm:$0xff]
    %v210 = vld [vmem:[#allocation10 + $0x78] sm:$0xff]
    %211 = vmatpush.msra.mxu0 %v210
    %212 = vmatpush.msra.mxu0 %v209
    %213 = vmatpush.msra.mxu0 %v208
    %214 = vmatpush.msra.mxu0 %v207
    %215 = vmatpush.msra.mxu0 %v206
    %216 = vmatpush.msra.mxu0 %v205
    %217 = vmatpush.msra.mxu0 %v204
    %218 = vmatpush.msra.mxu0 %v203
    %219 = vmatpush.msra.mxu0 %v202
    %220 = vmatpush.msra.mxu0 %v201
    %221 = vmatpush.msra.mxu0 %v200
    %222 = vmatpush.msra.mxu0 %v199
    %223 = vmatpush.msra.mxu0 %v198
    %224 = vmatpush.msra.mxu0 %v197
    %225 = vmatpush.msra.mxu0 %v196
    %226 = vmatpush.msra.mxu0 %v195
    %227 = vmatmul.f32.gmra.mxu0 %v122
    %v228 = vpop.f32.mrf.mxu0
    %v229 = vadd.f32 0.0, %v228
    %230 = vdwg.mxu0
    %v231 = vadd.f32 %v193, %v229
    %v232 = vld [vmem:[%s5] sm:$0x1]
    %v234 = vperm.slane %v232, 0
    %v236 = vadd.f32 %v231, %v234
    %v237 = vmul.f32 %v236, 0.5
    %v238 = vmul.f32 %v236, 0.70710677
    %v239 = vmul.f32 %v238, %v238
    %v240 = vmin.f32 16.0, %v239
    %v241 = vmul.f32 %v240, 2.1237322e-06
    %v242 = vadd.f32 %v241, 0.00028619796
    %v243 = vmul.f32 %v240, %v242
    %v244 = vadd.f32 %v243, 0.0036580483
    %v245 = vmul.f32 %v240, %v244
    %v246 = vadd.f32 %v245, 0.05243302
    %v247 = vmul.f32 %v240, %v246
    %v248 = vadd.f32 %v247, 0.18741608
    %v249 = vmul.f32 %v240, %v248
    %v250 = vadd.f32 %v249, 1.1283791
    %v251 = vmul.f32 %v238, %v250
    %v252 = vmul.f32 %v240, 3.8918573e-05
    %v253 = vadd.f32 %v252, 0.001143296
    %v254 = vmul.f32 %v240, %v253
    %v255 = vadd.f32 %v254, 0.014752088
    %v256 = vmul.f32 %v240, %v255
    %v257 = vadd.f32 %v256, 0.112945676
    %v258 = vmul.f32 %v240, %v257
    %v259 = vadd.f32 %v258, 0.4994258
    %v260 = vmul.f32 %v240, %v259
    %v261 = vadd.f32 %v260, 1.0
    %v262 = vrcp.pop %v261
    %v263 = vmul.f32 %v261, %v262
    %v264 = vsub.f32 1.0, %v263
    %v265 = vmul.f32 %v262, %v264
    %v266 = vadd.f32 %v262, %v265
    %vm267 = vweird.f32 %v261
    %vm268 = vweird.f32 %v262
    %vm269 = vmor %vm267, %vm268
    %v270 = vsel %vm269, %v262, %v266
    %v271 = vand.u32 2147483647, %v261
    %vm272 = vcmp.eq.f32.partialorder %v271, 8.507059e+37
    %v273 = vand.u32 %v261, 2147483648
    %v274 = vor.u32 1.1754944e-38, %v273
    %v275 = vsel %vm272, %v274, %v270
    %v276 = vmul.f32 %v251, %v275
    %v277 = vmin.f32 %v276, 1.0
    %v278 = vmax.f32 %v277, -1.0
    %v279 = vadd.f32 %v278, 1.0
    %v280 = vmul.f32 %v237, %v279
    %v281 = vld [vmem:[#allocation11] sm:$0xff]
    %v282 = vld [vmem:[#allocation11 + $0x8] sm:$0xff]
    %v283 = vld [vmem:[#allocation11 + $0x10] sm:$0xff]
    %v284 = vld [vmem:[#allocation11 + $0x18] sm:$0xff]
    %v285 = vld [vmem:[#allocation11 + $0x20] sm:$0xff]
    %v286 = vld [vmem:[#allocation11 + $0x28] sm:$0xff]
    %v287 = vld [vmem:[#allocation11 + $0x30] sm:$0xff]
    %v288 = vld [vmem:[#allocation11 + $0x38] sm:$0xff]
    %v289 = vld [vmem:[#allocation11 + $0x40] sm:$0xff]
    %v290 = vld [vmem:[#allocation11 + $0x48] sm:$0xff]
    %v291 = vld [vmem:[#allocation11 + $0x50] sm:$0xff]
    %v292 = vld [vmem:[#allocation11 + $0x58] sm:$0xff]
    %v293 = vld [vmem:[#allocation11 + $0x60] sm:$0xff]
    %v294 = vld [vmem:[#allocation11 + $0x68] sm:$0xff]
    %v295 = vld [vmem:[#allocation11 + $0x70] sm:$0xff]
    %v296 = vld [vmem:[#allocation11 + $0x78] sm:$0xff]
    %v297 = vld [vmem:[%s7] sm:$0x1]
    %v299 = vperm.slane %v297, 0
    %301 = vmatpush.msra.mxu0 %v296
    %302 = vmatpush.msra.mxu0 %v295
    %303 = vmatpush.msra.mxu0 %v294
    %304 = vmatpush.msra.mxu0 %v293
    %305 = vmatpush.msra.mxu0 %v292
    %306 = vmatpush.msra.mxu0 %v291
    %307 = vmatpush.msra.mxu0 %v290
    %308 = vmatpush.msra.mxu0 %v289
    %309 = vmatpush.msra.mxu0 %v288
    %310 = vmatpush.msra.mxu0 %v287
    %311 = vmatpush.msra.mxu0 %v286
    %312 = vmatpush.msra.mxu0 %v285
    %313 = vmatpush.msra.mxu0 %v284
    %314 = vmatpush.msra.mxu0 %v283
    %315 = vmatpush.msra.mxu0 %v282
    %316 = vmatpush.msra.mxu0 %v281
    %317 = vmatmul.f32.gmra.mxu0 %v280
    %v318 = vpop.f32.mrf.mxu0
    %v319 = vadd.f32 %v299, %v318
    %320 = vdwg.mxu0
    %321 = vst [vmem:[#allocation13] sm:$0xff] %v319
    // Predicated region
    $region58: #{tpu_custom_call.1} parent=1 // pred_check
      _
    $region59: #{tpu_custom_call.1} parent=1 // pred_check_branch
      %323 = sbr.rel (0) target = $region61
    $region60: #{tpu_custom_call.1} parent=1 // pred_region
      %325 = vsyncadd [#allocation4], 0
      %s327 = sshll.u32 [#allocation13], 4
      %s328 = int_to_ptr.vmem [resolvable:$true] %s327
      %s329 = sshll.u32 %s8, 4
      %s330 = int_to_ptr.hbm [resolvable:$true] %s329
      %332 = dma.vmem_to_hbm [thread:$0]  %s328, 128, %s330, [#allocation4]
    $region61: #{tpu_custom_call.1} parent=1 // pred_fallthru
      _
    // Predicated region
    $region62: #{tpu_custom_call.1} parent=1 // pred_check
      _
    $region63: #{tpu_custom_call.1} parent=1 // pred_check_branch
      %334 = sbr.rel (0) target = $region65
    $region64: #{tpu_custom_call.1} parent=1 // pred_region
      %336 = dma.done [#allocation4], 128
    $region65: #{tpu_custom_call.1} parent=1 // pred_fallthru
      _
    %337 = vsyncpa [#allocation3], 1
    %338 = vsyncpa [#allocation6], 1
    %339 = vsyncpa [#allocation9], 1
    %340 = vsyncpa [#allocation12], 1
    %341 = vsyncpa [#allocation4], 1

// kernel: tpu_custom_call.1
$region0: #{tpu_custom_call.1}
  #allocation0 [shape = 'u32[]', space=smem, size = 0x4, offset = 0x4, fixed_abs, tag = 'smem constant byte address 0x4 - core index']
  #allocation1 [shape = 'u32[72,128]{1,0:T(1,128)}', space=vmem, size = 0x9000, scoped, tag = 'internal scratch']
  %s0 = inlined_call_operand.hbm [shape: f32[8,128], index: 0, kind: input, shape index: {}]
  %s1 = inlined_call_operand.hbm [shape: f32[8,128], index: 1, kind: input, shape index: {}]
  %s2 = inlined_call_operand.hbm [shape: f32[128,128], index: 2, kind: input, shape index: {}]
  %s3 = inlined_call_operand.hbm [shape: f32[128,128], index: 3, kind: input, shape index: {}]
  %s4 = inlined_call_operand.hbm [shape: f32[128,128], index: 4, kind: input, shape index: {}]
  %s5 = inlined_call_operand.vmem [shape: f32[1,128], index: 5, kind: input, shape index: {}]
  %s6 = inlined_call_operand.hbm [shape: f32[128,128], index: 6, kind: input, shape index: {}]
  %s7 = inlined_call_operand.vmem [shape: f32[1,128], index: 7, kind: input, shape index: {}]
  %s8 = inlined_call_operand.hbm [shape: f32[8,128], index: 8, kind: output, shape index: {}]
  %s9 = sld [smem:[#allocation0]]
  $region66: #{tpu_custom_call.1} parent=0
    _
  %s11 = ssub.s32 1, %s9
  %s12 = scalar_select 0, %s11, %s9
  $region1: #{tpu_custom_call.1} parent=0
    #allocation2 [shape = 'u8[4096]{0}', space=vmem, size = 0x1000, scoped, tag = 'input window, operand 0, single buffered']
    #allocation3 [shape = 's32[1]{0}', space=sflag, size = 0x4, scoped, tag = 'scoped memory for tpu_custom_call.1']
    #allocation4 [shape = 's32[1]{0}', space=sflag, size = 0x4, scoped, tag = 'scoped memory for tpu_custom_call.1']
    #allocation5 [shape = 'u8[4096]{0}', space=vmem, size = 0x1000, scoped, tag = 'input window, operand 1, single buffered']
    #allocation6 [shape = 's32[1]{0}', space=sflag, size = 0x4, scoped, tag = 'scoped memory for tpu_custom_call.1']
    #allocation7 [shape = 'u8[65536]{0}', space=vmem, size = 0x10000, scoped, tag = 'input window, operand 2, single buffered']
    #allocation8 [shape = 'u8[65536]{0}', space=vmem, size = 0x10000, scoped, tag = 'input window, operand 3, single buffered']
    #allocation9 [shape = 's32[1]{0}', space=sflag, size = 0x4, scoped, tag = 'scoped memory for tpu_custom_call.1']
    #allocation10 [shape = 'u8[65536]{0}', space=vmem, size = 0x10000, scoped, tag = 'input window, operand 4, single buffered']
    #allocation11 [shape = 'u8[65536]{0}', space=vmem, size = 0x10000, scoped, tag = 'input window, operand 6, single buffered']
    #allocation12 [shape = 's32[1]{0}', space=sflag, size = 0x4, scoped, tag = 'scoped memory for tpu_custom_call.1']
    #allocation13 [shape = 'u8[4096]{0}', space=vmem, size = 0x1000, scoped, tag = 'output window, operand 0, single buffered']
    %13 = vsyncpa [#allocation3], 0
    %14 = vsyncpa [#allocation6], 0
    %15 = vsyncpa [#allocation9], 0
    %16 = vsyncpa [#allocation12], 0
    %17 = vsyncpa [#allocation4], 0
    // Predicated region
    $region2: #{tpu_custom_call.1} parent=1 // pred_check
      _
    $region3: #{tpu_custom_call.1} parent=1 // pred_check_branch
      %19 = sbr.rel (0) target = $region5
    $region4: #{tpu_custom_call.1} parent=1 // pred_region
      %21 = vsyncadd [#allocation3], 0
      %s23 = sshll.u32 %s0, 4
      %s24 = int_to_ptr.hbm [resolvable:$true] %s23
      %s25 = sshll.u32 [#allocation2], 4
      %s26 = int_to_ptr.vmem [resolvable:$true] %s25
      %28 = dma.hbm_to_vmem [thread:$0]  %s24, 128, %s26, [#allocation3]
    $region5: #{tpu_custom_call.1} parent=1 // pred_fallthru
      _
    // Predicated region
    $region6: #{tpu_custom_call.1} parent=1 // pred_check
      _
    $region7: #{tpu_custom_call.1} parent=1 // pred_check_branch
      %30 = sbr.rel (0) target = $region9
    $region8: #{tpu_custom_call.1} parent=1 // pred_region
      %32 = vsyncadd [#allocation6], 0
      %s34 = sshll.u32 %s1, 4
      %s35 = int_to_ptr.hbm [resolvable:$true] %s34
      %s36 = sshll.u32 [#allocation5], 4
      %s37 = int_to_ptr.vmem [resolvable:$true] %s36
      %39 = dma.hbm_to_vmem [thread:$0]  %s35, 128, %s37, [#allocation6]
    $region9: #{tpu_custom_call.1} parent=1 // pred_fallthru
      _
    // Predicated region
    $region10: #{tpu_custom_call.1} parent=1 // pred_check
      _
    $region11: #{tpu_custom_call.1} parent=1 // pred_check_branch
      %41 = sbr.rel (0) target = $region13
    $region12: #{tpu_custom_call.1} parent=1 // pred_region
      %43 = vsyncadd [#allocation6], 0
      %s44 = sshll.u32 %s2, 4
      %s45 = int_to_ptr.hbm [resolvable:$true] %s44
      %s46 = sshll.u32 [#allocation7], 4
      %s47 = int_to_ptr.vmem [resolvable:$true] %s46
      %52 = dma.hbm_to_vmem [thread:$0]  %s45, 2048, %s47, [#allocation6], 128, 128, 8
    $region13: #{tpu_custom_call.1} parent=1 // pred_fallthru
      _
    // Predicated region
    $region14: #{tpu_custom_call.1} parent=1 // pred_check
      _
    $region15: #{tpu_custom_call.1} parent=1 // pred_check_branch
      %54 = sbr.rel (0) target = $region17
    $region16: #{tpu_custom_call.1} parent=1 // pred_region
      %56 = vsyncadd [#allocation9], 0
      %s57 = sshll.u32 %s3, 4
      %s58 = int_to_ptr.hbm [resolvable:$true] %s57
      %s59 = sshll.u32 [#allocation8], 4
      %s60 = int_to_ptr.vmem [resolvable:$true] %s59
      %65 = dma.hbm_to_vmem [thread:$0]  %s58, 2048, %s60, [#allocation9], 128, 128, 8
    $region17: #{tpu_custom_call.1} parent=1 // pred_fallthru
      _
    // Predicated region
    $region18: #{tpu_custom_call.1} parent=1 // pred_check
      _
    $region19: #{tpu_custom_call.1} parent=1 // pred_check_branch
      %67 = sbr.rel (0) target = $region21
    $region20: #{tpu_custom_call.1} parent=1 // pred_region
      %69 = vsyncadd [#allocation9], 0
      %s70 = sshll.u32 %s4, 4
      %s71 = int_to_ptr.hbm [resolvable:$true] %s70
      %s72 = sshll.u32 [#allocation10], 4
      %s73 = int_to_ptr.vmem [resolvable:$true] %s72
      %78 = dma.hbm_to_vmem [thread:$0]  %s71, 2048, %s73, [#allocation9], 128, 128, 8
    $region21: #{tpu_custom_call.1} parent=1 // pred_fallthru
      _
    // Predicated region
    $region22: #{tpu_custom_call.1} parent=1 // pred_check
      _
    $region23: #{tpu_custom_call.1} parent=1 // pred_check_branch
      %80 = sbr.rel (0) target = $region25
    $region24: #{tpu_custom_call.1} parent=1 // pred_region
      _
    $region25: #{tpu_custom_call.1} parent=1 // pred_fallthru
      _
    // Predicated region
    $region26: #{tpu_custom_call.1} parent=1 // pred_check
      _
    $region27: #{tpu_custom_call.1} parent=1 // pred_check_branch
      %82 = sbr.rel (0) target = $region29
    $region28: #{tpu_custom_call.1} parent=1 // pred_region
      %84 = vsyncadd [#allocation12], 0
      %s85 = sshll.u32 %s6, 4
      %s86 = int_to_ptr.hbm [resolvable:$true] %s85
      %s87 = sshll.u32 [#allocation11], 4
      %s88 = int_to_ptr.vmem [resolvable:$true] %s87
      %93 = dma.hbm_to_vmem [thread:$0]  %s86, 2048, %s88, [#allocation12], 128, 128, 8
    $region29: #{tpu_custom_call.1} parent=1 // pred_fallthru
      _
    // Predicated region
    $region30: #{tpu_custom_call.1} parent=1 // pred_check
      _
    $region31: #{tpu_custom_call.1} parent=1 // pred_check_branch
      %95 = sbr.rel (0) target = $region33
    $region32: #{tpu_custom_call.1} parent=1 // pred_region
      _
    $region33: #{tpu_custom_call.1} parent=1 // pred_fallthru
      _
    // Predicated region
    $region34: #{tpu_custom_call.1} parent=1 // pred_check
      _
    $region35: #{tpu_custom_call.1} parent=1 // pred_check_branch
      %97 = sbr.rel (0) target = $region37
    $region36: #{tpu_custom_call.1} parent=1 // pred_region
      %99 = dma.done [#allocation3], 128
    $region37: #{tpu_custom_call.1} parent=1 // pred_fallthru
      _
    // Predicated region
    $region38: #{tpu_custom_call.1} parent=1 // pred_check
      _
    $region39: #{tpu_custom_call.1} parent=1 // pred_check_branch
      %101 = sbr.rel (0) target = $region41
    $region40: #{tpu_custom_call.1} parent=1 // pred_region
      %103 = dma.done [#allocation6], 128
    $region41: #{tpu_custom_call.1} parent=1 // pred_fallthru
      _
    // Predicated region
    $region42: #{tpu_custom_call.1} parent=1 // pred_check
      _
    $region43: #{tpu_custom_call.1} parent=1 // pred_check_branch
      %105 = sbr.rel (0) target = $region45
    $region44: #{tpu_custom_call.1} parent=1 // pred_region
      %107 = dma.done [#allocation6], 2048
    $region45: #{tpu_custom_call.1} parent=1 // pred_fallthru
      _
    // Predicated region
    $region46: #{tpu_custom_call.1} parent=1 // pred_check
      _
    $region47: #{tpu_custom_call.1} parent=1 // pred_check_branch
      %109 = sbr.rel (0) target = $region49
    $region48: #{tpu_custom_call.1} parent=1 // pred_region
      %111 = dma.done [#allocation9], 2048
    $region49: #{tpu_custom_call.1} parent=1 // pred_fallthru
      _
    // Predicated region
    $region50: #{tpu_custom_call.1} parent=1 // pred_check
      _
    $region51: #{tpu_custom_call.1} parent=1 // pred_check_branch
      %113 = sbr.rel (0) target = $region53
    $region52: #{tpu_custom_call.1} parent=1 // pred_region
      %115 = dma.done [#allocation9], 2048
    $region53: #{tpu_custom_call.1} parent=1 // pred_fallthru
      _
    // Predicated region
    $region54: #{tpu_custom_call.1} parent=1 // pred_check
      _
    $region55: #{tpu_custom_call.1} parent=1 // pred_check_branch
      %117 = sbr.rel (0) target = $region57
    $region56: #{tpu_custom_call.1} parent=1 // pred_region
      %119 = dma.done [#allocation12], 2048
    $region57: #{tpu_custom_call.1} parent=1 // pred_fallthru
      _
    %v120 = vld [vmem:[#allocation2] sm:$0xff]
    %v121 = vld [vmem:[#allocation5] sm:$0xff]
    %v122 = vmul.f32 %v120, %v121
    %v123 = vld [vmem:[#allocation7] sm:$0xff]
    %v124 = vld [vmem:[#allocation7 + $0x8] sm:$0xff]
    %v125 = vld [vmem:[#allocation7 + $0x10] sm:$0xff]
    %v126 = vld [vmem:[#allocation7 + $0x18] sm:$0xff]
    %v127 = vld [vmem:[#allocation7 + $0x20] sm:$0xff]
    %v128 = vld [vmem:[#allocation7 + $0x28] sm:$0xff]
    %v129 = vld [vmem:[#allocation7 + $0x30] sm:$0xff]
    %v130 = vld [vmem:[#allocation7 + $0x38] sm:$0xff]
    %v131 = vld [vmem:[#allocation7 + $0x40] sm:$0xff]
    %v132 = vld [vmem:[#allocation7 + $0x48] sm:$0xff]
    %v133 = vld [vmem:[#allocation7 + $0x50] sm:$0xff]
    %v134 = vld [vmem:[#allocation7 + $0x58] sm:$0xff]
    %v135 = vld [vmem:[#allocation7 + $0x60] sm:$0xff]
    %v136 = vld [vmem:[#allocation7 + $0x68] sm:$0xff]
    %v137 = vld [vmem:[#allocation7 + $0x70] sm:$0xff]
    %v138 = vld [vmem:[#allocation7 + $0x78] sm:$0xff]
    %v139 = vld [vmem:[#allocation8] sm:$0xff]
    %v140 = vld [vmem:[#allocation8 + $0x8] sm:$0xff]
    %v141 = vld [vmem:[#allocation8 + $0x10] sm:$0xff]
    %v142 = vld [vmem:[#allocation8 + $0x18] sm:$0xff]
    %v143 = vld [vmem:[#allocation8 + $0x20] sm:$0xff]
    %v144 = vld [vmem:[#allocation8 + $0x28] sm:$0xff]
    %v145 = vld [vmem:[#allocation8 + $0x30] sm:$0xff]
    %v146 = vld [vmem:[#allocation8 + $0x38] sm:$0xff]
    %v147 = vld [vmem:[#allocation8 + $0x40] sm:$0xff]
    %v148 = vld [vmem:[#allocation8 + $0x48] sm:$0xff]
    %v149 = vld [vmem:[#allocation8 + $0x50] sm:$0xff]
    %v150 = vld [vmem:[#allocation8 + $0x58] sm:$0xff]
    %v151 = vld [vmem:[#allocation8 + $0x60] sm:$0xff]
    %v152 = vld [vmem:[#allocation8 + $0x68] sm:$0xff]
    %v153 = vld [vmem:[#allocation8 + $0x70] sm:$0xff]
    %v154 = vld [vmem:[#allocation8 + $0x78] sm:$0xff]
    %155 = vmatpush.msra.mxu0 %v154
    %156 = vmatpush.msra.mxu0 %v153
    %157 = vmatpush.msra.mxu0 %v152
    %158 = vmatpush.msra.mxu0 %v151
    %159 = vmatpush.msra.mxu0 %v150
    %160 = vmatpush.msra.mxu0 %v149
    %161 = vmatpush.msra.mxu0 %v148
    %162 = vmatpush.msra.mxu0 %v147
    %163 = vmatpush.msra.mxu0 %v146
    %164 = vmatpush.msra.mxu0 %v145
    %165 = vmatpush.msra.mxu0 %v144
    %166 = vmatpush.msra.mxu0 %v143
    %167 = vmatpush.msra.mxu0 %v142
    %168 = vmatpush.msra.mxu0 %v141
    %169 = vmatpush.msra.mxu0 %v140
    %170 = vmatpush.msra.mxu0 %v139
    %171 = vmatmul.f32.gmra.mxu0 %v121
    %v172 = vpop.f32.mrf.mxu0
    %v173 = vadd.f32 0.0, %v172
    %174 = vdwg.mxu0
    %175 = vmatpush.msra.mxu0 %v138
    %176 = vmatpush.msra.mxu0 %v137
    %177 = vmatpush.msra.mxu0 %v136
    %178 = vmatpush.msra.mxu0 %v135
    %179 = vmatpush.msra.mxu0 %v134
    %180 = vmatpush.msra.mxu0 %v133
    %181 = vmatpush.msra.mxu0 %v132
    %182 = vmatpush.msra.mxu0 %v131
    %183 = vmatpush.msra.mxu0 %v130
    %184 = vmatpush.msra.mxu0 %v129
    %185 = vmatpush.msra.mxu0 %v128
    %186 = vmatpush.msra.mxu0 %v127
    %187 = vmatpush.msra.mxu0 %v126
    %188 = vmatpush.msra.mxu0 %v125
    %189 = vmatpush.msra.mxu0 %v124
    %190 = vmatpush.msra.mxu0 %v123
    %191 = vmatmul.f32.gmra.mxu0 %v120
    %v192 = vpop.f32.mrf.mxu0
    %v193 = vadd.f32 %v173, %v192
    %194 = vdwg.mxu0
    %v195 = vld [vmem:[#allocation10] sm:$0xff]
    %v196 = vld [vmem:[#allocation10 + $0x8] sm:$0xff]
    %v197 = vld [vmem:[#allocation10 + $0x10] sm:$0xff]
    %v198 = vld [vmem:[#allocation10 + $0x18] sm:$0xff]
    %v199 = vld [vmem:[#allocation10 + $0x20] sm:$0xff]
    %v200 = vld [vmem:[#allocation10 + $0x28] sm:$0xff]
    %v201 = vld [vmem:[#allocation10 + $0x30] sm:$0xff]
    %v202 = vld [vmem:[#allocation10 + $0x38] sm:$0xff]
    %v203 = vld [vmem:[#allocation10 + $0x40] sm:$0xff]
    %v204 = vld [vmem:[#allocation10 + $0x48] sm:$0xff]
    %v205 = vld [vmem:[#allocation10 + $0x50] sm:$0xff]
    %v206 = vld [vmem:[#allocation10 + $0x58] sm:$0xff]
    %v207 = vld [vmem:[#allocation10 + $0x60] sm:$0xff]
    %v208 = vld [vmem:[#allocation10 + $0x68] sm:$0xff]
    %v209 = vld [vmem:[#allocation10 + $0x70] sm:$0xff]
    %v210 = vld [vmem:[#allocation10 + $0x78] sm:$0xff]
    %211 = vmatpush.msra.mxu0 %v210
    %212 = vmatpush.msra.mxu0 %v209
    %213 = vmatpush.msra.mxu0 %v208
    %214 = vmatpush.msra.mxu0 %v207
    %215 = vmatpush.msra.mxu0 %v206
    %216 = vmatpush.msra.mxu0 %v205
    %217 = vmatpush.msra.mxu0 %v204
    %218 = vmatpush.msra.mxu0 %v203
    %219 = vmatpush.msra.mxu0 %v202
    %220 = vmatpush.msra.mxu0 %v201
    %221 = vmatpush.msra.mxu0 %v200
    %222 = vmatpush.msra.mxu0 %v199
    %223 = vmatpush.msra.mxu0 %v198
    %224 = vmatpush.msra.mxu0 %v197
    %225 = vmatpush.msra.mxu0 %v196
    %226 = vmatpush.msra.mxu0 %v195
    %227 = vmatmul.f32.gmra.mxu0 %v122
    %v228 = vpop.f32.mrf.mxu0
    %v229 = vadd.f32 0.0, %v228
    %230 = vdwg.mxu0
    %v231 = vadd.f32 %v193, %v229
    %v232 = vld [vmem:[%s5] sm:$0x1]
    %v234 = vperm.slane %v232, 0
    %v236 = vadd.f32 %v231, %v234
    %v237 = vmul.f32 %v236, 0.5
    %v238 = vmul.f32 %v236, 0.70710677
    %v239 = vmul.f32 %v238, %v238
    %v240 = vmin.f32 16.0, %v239
    %v241 = vmul.f32 %v240, 2.1237322e-06
    %v242 = vadd.f32 %v241, 0.00028619796
    %v243 = vmul.f32 %v240, %v242
    %v244 = vadd.f32 %v243, 0.0036580483
    %v245 = vmul.f32 %v240, %v244
    %v246 = vadd.f32 %v245, 0.05243302
    %v247 = vmul.f32 %v240, %v246
    %v248 = vadd.f32 %v247, 0.18741608
    %v249 = vmul.f32 %v240, %v248
    %v250 = vadd.f32 %v249, 1.1283791
    %v251 = vmul.f32 %v238, %v250
    %v252 = vmul.f32 %v240, 3.8918573e-05
    %v253 = vadd.f32 %v252, 0.001143296
    %v254 = vmul.f32 %v240, %v253
    %v255 = vadd.f32 %v254, 0.014752088
    %v256 = vmul.f32 %v240, %v255
    %v257 = vadd.f32 %v256, 0.112945676
    %v258 = vmul.f32 %v240, %v257
    %v259 = vadd.f32 %v258, 0.4994258
    %v260 = vmul.f32 %v240, %v259
    %v261 = vadd.f32 %v260, 1.0
    %v262 = vrcp.pop %v261
    %v263 = vmul.f32 %v261, %v262
    %v264 = vsub.f32 1.0, %v263
    %v265 = vmul.f32 %v262, %v264
    %v266 = vadd.f32 %v262, %v265
    %vm267 = vweird.f32 %v261
    %vm268 = vweird.f32 %v262
    %vm269 = vmor %vm267, %vm268
    %v270 = vsel %vm269, %v262, %v266
    %v271 = vand.u32 2147483647, %v261
    %vm272 = vcmp.eq.f32.partialorder %v271, 8.507059e+37
    %v273 = vand.u32 %v261, 2147483648
    %v274 = vor.u32 1.1754944e-38, %v273
    %v275 = vsel %vm272, %v274, %v270
    %v276 = vmul.f32 %v251, %v275
    %v277 = vmin.f32 %v276, 1.0
    %v278 = vmax.f32 %v277, -1.0
    %v279 = vadd.f32 %v278, 1.0
    %v280 = vmul.f32 %v237, %v279
    %v281 = vld [vmem:[#allocation11] sm:$0xff]
    %v282 = vld [vmem:[#allocation11 + $0x8] sm:$0xff]
    %v283 = vld [vmem:[#allocation11 + $0x10] sm:$0xff]
    %v284 = vld [vmem:[#allocation11 + $0x18] sm:$0xff]
    %v285 = vld [vmem:[#allocation11 + $0x20] sm:$0xff]
    %v286 = vld [vmem:[#allocation11 + $0x28] sm:$0xff]
    %v287 = vld [vmem:[#allocation11 + $0x30] sm:$0xff]
    %v288 = vld [vmem:[#allocation11 + $0x38] sm:$0xff]
    %v289 = vld [vmem:[#allocation11 + $0x40] sm:$0xff]
    %v290 = vld [vmem:[#allocation11 + $0x48] sm:$0xff]
    %v291 = vld [vmem:[#allocation11 + $0x50] sm:$0xff]
    %v292 = vld [vmem:[#allocation11 + $0x58] sm:$0xff]
    %v293 = vld [vmem:[#allocation11 + $0x60] sm:$0xff]
    %v294 = vld [vmem:[#allocation11 + $0x68] sm:$0xff]
    %v295 = vld [vmem:[#allocation11 + $0x70] sm:$0xff]
    %v296 = vld [vmem:[#allocation11 + $0x78] sm:$0xff]
    %v297 = vld [vmem:[%s7] sm:$0x1]
    %v299 = vperm.slane %v297, 0
    %301 = vmatpush.msra.mxu0 %v296
    %302 = vmatpush.msra.mxu0 %v295
    %303 = vmatpush.msra.mxu0 %v294
    %304 = vmatpush.msra.mxu0 %v293
    %305 = vmatpush.msra.mxu0 %v292
    %306 = vmatpush.msra.mxu0 %v291
    %307 = vmatpush.msra.mxu0 %v290
    %308 = vmatpush.msra.mxu0 %v289
    %309 = vmatpush.msra.mxu0 %v288
    %310 = vmatpush.msra.mxu0 %v287
    %311 = vmatpush.msra.mxu0 %v286
    %312 = vmatpush.msra.mxu0 %v285
    %313 = vmatpush.msra.mxu0 %v284
    %314 = vmatpush.msra.mxu0 %v283
    %315 = vmatpush.msra.mxu0 %v282
    %316 = vmatpush.msra.mxu0 %v281
    %317 = vmatmul.f32.gmra.mxu0 %v280
    %v318 = vpop.f32.mrf.mxu0
    %v319 = vadd.f32 %v299, %v318
    %320 = vdwg.mxu0
    %321 = vst [vmem:[#allocation13] sm:$0xff] %v319
    // Predicated region
    $region58: #{tpu_custom_call.1} parent=1 // pred_check
      _
    $region59: #{tpu_custom_call.1} parent=1 // pred_check_branch
      %323 = sbr.rel (0) target = $region61
    $region60: #{tpu_custom_call.1} parent=1 // pred_region
      %325 = vsyncadd [#allocation4], 0
      %s327 = sshll.u32 [#allocation13], 4
      %s328 = int_to_ptr.vmem [resolvable:$true] %s327
      %s329 = sshll.u32 %s8, 4
      %s330 = int_to_ptr.hbm [resolvable:$true] %s329
      %332 = dma.vmem_to_hbm [thread:$0]  %s328, 128, %s330, [#allocation4]
    $region61: #{tpu_custom_call.1} parent=1 // pred_fallthru
      _
    // Predicated region
    $region62: #{tpu_custom_call.1} parent=1 // pred_check
      _
    $region63: #{tpu_custom_call.1} parent=1 // pred_check_branch
      %334 = sbr.rel (0) target = $region65
    $region64: #{tpu_custom_call.1} parent=1 // pred_region
      %336 = dma.done [#allocation4], 128
    $region65: #{tpu_custom_call.1} parent=1 // pred_fallthru
      _
    %337 = vsyncpa [#allocation3], 1
    %338 = vsyncpa [#allocation6], 1
    %339 = vsyncpa [#allocation9], 1
    %340 = vsyncpa [#allocation12], 1
    %341 = vsyncpa [#allocation4], 1

</llo_original>
